<compile_context>
chip_gen: v6e
topology: v6e:2x2x1
jax: 0.10.0
libtpu: 0.0.40
codegen_flags: <defaults>
</compile_context>

<pallas_src>
import math

import jax
import jax.numpy as jnp
import numpy as np
from jax.experimental import pallas as pl
from jax.experimental.pallas import tpu as pltpu


def _detect_vmem_bytes() -> int:
    """Physical VMEM of the local TPU generation (conservative fallback)."""
    try:
        info = pltpu.get_tpu_info()
        for attr in ("vmem_capacity_bytes", "vmem_bytes", "vmem_size_bytes"):
            v = getattr(info, attr, None)
            if v:
                return int(v)
    except Exception:
        pass
    return 64 << 20  # v7x per-TensorCore VMEM: smallest current generation


_VMEM_BYTES = _detect_vmem_bytes()


def _sample_group(c_in: int, c_out: int) -> int:
    """Smallest #samples whose fused rows hit 8-sublane alignment for x & out."""
    return math.lcm(8 // math.gcd(c_in, 8), 8 // math.gcd(c_out, 8))


def _pick_block_n(n: int, c_in: int, c_out: int, hw: int, itemsize: int,
                  vmem_bytes: int):
    """Samples per grid step (nb) and per inner-loop group (g)."""
    g = _sample_group(c_in, c_out)
    bytes_per_sample = (c_in + c_out) * hw * itemsize
    # Double-buffered (x block + out block) kept within ~3/8 of physical VMEM
    # (~24 MiB on v7x, ~48 MiB on v5e/v6e); weight/bias are negligible.
    budget = (vmem_bytes * 3) // 8
    nb_vmem = max(1, budget // (2 * bytes_per_sample))
    # Keep >= 4 grid steps so v7x's two TensorCores both get work and the
    # pipeline overlaps DMA with compute; cheap on single-TC v5e/v6e.
    nb_grid = max(1, -(-n // 4))
    nb = min(nb_vmem, nb_grid)
    nb = max(g, (nb // g) * g)          # sublane alignment of the 2D tiles
    return nb, g


def _make_projection_kernel(nb: int, g: int, c_in: int, c_out: int, hw: int):
    n_groups = nb // g

    def kernel(w_ref, b_ref, x_ref, o_ref):
        w = w_ref[...]                                       # (C_out, C_in), hoisted
        b = jnp.broadcast_to(b_ref[...], (c_out, hw))        # bias broadcast, hoisted
        if g > 1:
            b = jnp.concatenate([b] * g, axis=0)             # (g*C_out, HW)

        @pl.loop(0, n_groups)
        def _(gi):
            xi = pl.multiple_of(gi * (g * c_in), g * c_in)
            oi = pl.multiple_of(gi * (g * c_out), g * c_out)
            xs = x_ref[pl.ds(xi, g * c_in), :]               # aligned (g*C_in, HW) load
            ys = [jnp.dot(w, xs[j * c_in:(j + 1) * c_in, :],
                          preferred_element_type=jnp.float32)
                  for j in range(g)]
            y = ys[0] if g == 1 else jnp.concatenate(ys, axis=0)   # (g*C_out, HW)
            o_ref[pl.ds(oi, g * c_out), :] = (y + b).astype(o_ref.dtype)

    return kernel


@jax.jit
def projection_forward(x, weight, bias):
    """Mirrors Projection.forward.

    x: (B, C_in, H, W) or (B, T, C_in, H, W)
    weight: (C_out, C_in, 1, 1)   (PyTorch Conv2d layout)
    bias:   (C_out,)
    """
    c_out, c_in = weight.shape[0], weight.shape[1]
    lead = x.shape[:-3]                      # (B,) or (B, T)
    H, W = x.shape[-2:]
    N = int(np.prod(lead))
    HW = H * W

    nb, g = _pick_block_n(N, c_in, c_out, HW, x.dtype.itemsize, _VMEM_BYTES)
    grid = -(-N // nb)                       # ceil-div; tail handled by padding
    n_pad = grid * nb

    x3 = x.reshape(N, c_in, HW)              # pure reshape, no transpose
    if n_pad != N:
        x3 = jnp.pad(x3, ((0, n_pad - N), (0, 0), (0, 0)))
    x2 = x3.reshape(n_pad * c_in, HW)        # lane-dense 2D slab
    w2 = weight.reshape(c_out, c_in)
    b2 = bias.reshape(c_out, 1)

    kernel = _make_projection_kernel(nb, g, c_in, c_out, HW)

    itemsize = x.dtype.itemsize
    cost = pl.CostEstimate(
        flops=2 * n_pad * c_out * c_in * HW,
        transcendentals=0,
        bytes_accessed=(n_pad * (c_in + c_out) * HW * itemsize
                        + w2.size * w2.dtype.itemsize
                        + b2.size * b2.dtype.itemsize),
    )

    out2 = pl.pallas_call(
        kernel,
        out_shape=jax.ShapeDtypeStruct((n_pad * c_out, HW), x.dtype),
        grid=(grid,),
        in_specs=[
            pl.BlockSpec((c_out, c_in), lambda n: (0, 0)),     # weight, resident
            pl.BlockSpec((c_out, 1), lambda n: (0, 0)),        # bias, resident
            pl.BlockSpec((nb * c_in, HW), lambda n: (n, 0)),   # x slab
        ],
        out_specs=pl.BlockSpec((nb * c_out, HW), lambda n: (n, 0)),
        compiler_params=pltpu.CompilerParams(
            dimension_semantics=("parallel",),
            vmem_limit_bytes=int(min(_VMEM_BYTES * 3 // 4, 100 << 20)),
        ),
        cost_estimate=cost,
    )(w2, b2, x2)

    out = out2.reshape(n_pad, c_out, HW)[:N]
    return out.reshape(lead + (c_out, H, W))


# ------------------------- pure-JAX reference --------------------------- #

def projection_forward_ref(x, weight, bias):
    def conv(x4):
        y = jax.lax.conv_general_dilated(
            x4, weight, window_strides=(1, 1), padding="VALID",
            dimension_numbers=("NCHW", "OIHW", "NCHW"))
        return y + bias[None, :, None, None]

    if x.ndim == 5:
        B, T = x.shape[:2]
        y = conv(x.reshape((B * T,) + x.shape[2:]))
        return y.reshape((B, T) + y.shape[1:])
    return conv(x)


# ------------------------------- main ------------------------------------ #

if __name__ == "__main__":
    B, T, C_IN, C_OUT, H, W = 2, 8, 16, 4, 16, 16

    key = jax.random.PRNGKey(0)
    k_x5, k_x4, k_w, k_b = jax.random.split(key, 4)

    # PyTorch-like uniform init for Conv2d(in, out, 1).
    bound = 1.0 / np.sqrt(C_IN * 1 * 1)
    weight = jax.random.uniform(k_w, (C_OUT, C_IN, 1, 1), jnp.float32,
                                -bound, bound)
    bias = jax.random.uniform(k_b, (C_OUT,), jnp.float32, -bound, bound)

    x5 = jax.random.normal(k_x5, (B, T, C_IN, H, W), jnp.float32)  # time series
    x4 = jax.random.normal(k_x4, (B, C_IN, H, W), jnp.float32)     # single frame

    y5 = jax.block_until_ready(projection_forward(x5, weight, bias))
    y4 = jax.block_until_ready(projection_forward(x4, weight, bias))

    assert y5.shape == (B, T, C_OUT, H, W), y5.shape
    assert y4.shape == (B, C_OUT, H, W), y4.shape

    y5_ref = projection_forward_ref(x5, weight, bias)
    y4_ref = projection_forward_ref(x4, weight, bias)
    np.testing.assert_allclose(np.asarray(y5), np.asarray(y5_ref),
                               atol=1e-5, rtol=1e-5)
    np.testing.assert_allclose(np.asarray(y4), np.asarray(y4_ref),
                               atol=1e-5, rtol=1e-5)

    print("KERNEL_OK")
</pallas_src>

<mosaic_0001>
module attributes {stable_mosaic.version = 11 : i64} {
  func.func @kernel(%arg0: i32, %arg1: memref<4x16xf32, #tpu.memory_space<vmem>>, %arg2: memref<4x1xf32, #tpu.memory_space<vmem>>, %arg3: memref<64x256xf32, #tpu.memory_space<vmem>>, %arg4: memref<16x256xf32, #tpu.memory_space<vmem>>) attributes {dimension_semantics = [#tpu.dimension_semantics<parallel>], iteration_bounds = array<i64: 4>, scalar_prefetch = 0 : i64, scratch_operands = 0 : i64, tpu.core_type = #tpu.core_type<tc>, window_params = [{pipeline_mode = #tpu.pipeline_mode<synchronous>, transform_indices = @transform_0, window_bounds = array<i64: 4, 16>}, {pipeline_mode = #tpu.pipeline_mode<synchronous>, transform_indices = @transform_1, window_bounds = array<i64: 4, 1>}, {transform_indices = @transform_2, window_bounds = array<i64: 64, 256>}, {transform_indices = @transform_3, window_bounds = array<i64: 16, 256>}]} {
    %c0 = arith.constant 0 : index
    %c0_0 = arith.constant 0 : index
    %0 = vector.load %arg1[%c0, %c0_0] : memref<4x16xf32, #tpu.memory_space<vmem>>, vector<4x16xf32>
    %c0_1 = arith.constant 0 : index
    %c0_2 = arith.constant 0 : index
    %1 = vector.load %arg2[%c0_1, %c0_2] : memref<4x1xf32, #tpu.memory_space<vmem>>, vector<4x1xf32>
    %2 = vector.shape_cast %1 : vector<4x1xf32> to vector<4x1xf32>
    %3 = vector.broadcast %2 : vector<4x1xf32> to vector<4x256xf32>
    %4 = tpu.concatenate %3, %3 in 0 : vector<4x256xf32>, vector<4x256xf32> -> vector<8x256xf32>
    %c0_i32 = arith.constant 0 : i32
    %c2_i32 = arith.constant 2 : i32
    %5 = arith.addi %c0_i32, %c2_i32 : i32
    %c1_i32 = arith.constant 1 : i32
    scf.for %arg5 = %c0_i32 to %5 step %c1_i32  : i32 {
      %c1_i32_4 = arith.constant 1 : i32
      %6 = arith.muli %arg5, %c1_i32_4 : i32
      %c0_i32_5 = arith.constant 0 : i32
      %7 = arith.addi %c0_i32_5, %6 : i32
      %c32_i32 = arith.constant 32 : i32
      %8 = arith.muli %7, %c32_i32 : i32
      %9 = tpu.assume_multiple %8, 32 : i32
      %c8_i32 = arith.constant 8 : i32
      %10 = arith.muli %7, %c8_i32 : i32
      %11 = tpu.assume_multiple %10, 8 : i32
      %12 = arith.index_cast %9 : i32 to index
      %c0_6 = arith.constant 0 : index
      %13 = vector.load %arg3[%12, %c0_6] : memref<64x256xf32, #tpu.memory_space<vmem>>, vector<32x256xf32>
      %14 = vector.extract_strided_slice %13 {offsets = [0, 0], sizes = [16, 256], strides = [1, 1]} : vector<32x256xf32> to vector<16x256xf32>
      %cst = arith.constant dense<0.000000e+00> : vector<4x256xf32>
      %15 = tpu.matmul %0, %14, %cst {dimension_numbers = #tpu.dot_dimension_numbers<[1], [0], [0], [1], [0, 0, 1, 1], [], []>} : vector<4x16xf32>, vector<16x256xf32>, vector<4x256xf32> -> vector<4x256xf32>
      %16 = vector.extract_strided_slice %13 {offsets = [16, 0], sizes = [16, 256], strides = [1, 1]} : vector<32x256xf32> to vector<16x256xf32>
      %cst_7 = arith.constant dense<0.000000e+00> : vector<4x256xf32>
      %17 = tpu.matmul %0, %16, %cst_7 {dimension_numbers = #tpu.dot_dimension_numbers<[1], [0], [0], [1], [0, 0, 1, 1], [], []>} : vector<4x16xf32>, vector<16x256xf32>, vector<4x256xf32> -> vector<4x256xf32>
      %18 = tpu.concatenate %15, %17 in 0 : vector<4x256xf32>, vector<4x256xf32> -> vector<8x256xf32>
      %19 = arith.addf %18, %4 : vector<8x256xf32>
      %20 = arith.index_cast %11 : i32 to index
      %c0_8 = arith.constant 0 : index
      %21 = vector.load %arg4[%20, %c0_8] : memref<16x256xf32, #tpu.memory_space<vmem>>, vector<8x256xf32>
      tpu.vector_store %arg4[%20, %c0_8], %19 {strides = array<i32>} : memref<16x256xf32, #tpu.memory_space<vmem>>, vector<8x256xf32>,
    }
    %c2_i32_3 = arith.constant 2 : i32
    return
  }
  func.func @transform_0(%arg0: i32) -> (i32, i32) {
    %c0_i32 = arith.constant 0 : i32
    %c0_i32_0 = arith.constant 0 : i32
    %c0_i32_1 = arith.constant 0 : i32
    return %c0_i32, %c0_i32_0 : i32, i32
  }
  func.func @transform_1(%arg0: i32) -> (i32, i32) {
    %c0_i32 = arith.constant 0 : i32
    %c0_i32_0 = arith.constant 0 : i32
    %c0_i32_1 = arith.constant 0 : i32
    return %c0_i32, %c0_i32_0 : i32, i32
  }
  func.func @transform_2(%arg0: i32) -> (i32, i32) {
    %c0_i32 = arith.constant 0 : i32
    %c0_i32_0 = arith.constant 0 : i32
    return %arg0, %c0_i32 : i32, i32
  }
  func.func @transform_3(%arg0: i32) -> (i32, i32) {
    %c0_i32 = arith.constant 0 : i32
    %c0_i32_0 = arith.constant 0 : i32
    return %arg0, %c0_i32 : i32, i32
  }
}

</mosaic_0001>

<llo_original>
// kernel: projection_forward.1
$region0: #{projection_forward.1}
  #allocation0 [shape = 'u32[]', space=smem, size = 0x4, offset = 0x4, fixed_abs, tag = 'smem constant byte address 0x4 - core index']
  #allocation1 [shape = 'u32[144,128]{1,0:T(1,128)}', space=vmem, size = 0x12000, scoped, tag = 'internal scratch']
  %s0 = inlined_call_operand.vmem [shape: f32[4,16], index: 0, kind: input, shape index: {}]
  %s1 = inlined_call_operand.vmem [shape: f32[4,1], index: 1, kind: input, shape index: {}]
  %s2 = inlined_call_operand.vmem [shape: f32[256,256], index: 2, kind: input, shape index: {}]
  %s3 = inlined_call_operand.vmem [shape: f32[64,256], index: 3, kind: output, shape index: {}]
  %s4 = sld [smem:[#allocation0]]
  $region52: #{projection_forward.1} parent=0
    _
  %s6 = ssub.s32 1, %s4
  %s7 = scalar_select 0, %s6, %s4
  loop: start=0, step=1, limit=6
  $region2: #{projection_forward.1} parent=0 // loop_pre_header
    _
  $region3: #{projection_forward.1} parent=0 // loop_header
    %s9 = sphi 0, %s13
    %p10 = scmp.ge.s32.totalorder %s9, 6
    %s17 = sphi 0, %s17
    %s19 = sphi 0, %s17
    %s20 = sphi 0, %s19
    %s34 = sphi 0, %s20
    %s38 = sphi 0, %s38
    %s40 = sphi 0, %s38
    %s41 = sphi 0, %s40
    %s55 = sphi 0, %s41
    %s61 = sphi 0, %s63
    %s64 = sphi 0, %s61
    %s65 = sphi 0, %s64
    %s81 = sphi 0, %s65
    %s87 = sphi 0, %s89
    %s90 = sphi 0, %s87
    %s91 = sphi 0, %s90
    %s107 = sphi 0, %s91
  $region4: #{projection_forward.1} parent=0 // loop_header_branch
    %12 = sbr.rel (%p10) target = $region8
  $region5: #{projection_forward.1} parent=0 // loop_body
    %s14 = ssub.s32 %s9, 1
    %s15 = ssub.s32 %s9, 2
    %s16 = sadd.s32 %s9, 1
    %s18 = sadd.s32 %s17, 1
    %p21 = scmp.eq.s32.totalorder %s9, 3
    %p22 = scmp.ne.s32.totalorder %s17, %s19
    %p23 = scmp.eq.s32.totalorder %s9, 0
    %p24 = por %p22, %p23
    %p25 = scmp.ne.s32.totalorder %s17, %s19
    %p26 = scmp.eq.s32.totalorder %s14, 3
    %p27 = por %p25, %p26
    %p28 = scmp.ne.s32.totalorder %s19, %s20
    %p29 = scmp.eq.s32.totalorder %s14, 0
    %p30 = por %p28, %p29
    %p31 = scmp.ne.s32.totalorder %s19, %s20
    %p32 = scmp.eq.s32.totalorder %s15, 3
    %p33 = por %p31, %p32
    %p35 = scmp.ne.s32.totalorder %s20, %s34
    %p36 = scmp.eq.s32.totalorder %s15, 0
    %p37 = por %p35, %p36
    %s39 = sadd.s32 %s38, 1
    %p42 = scmp.eq.s32.totalorder %s9, 3
    %p43 = scmp.ne.s32.totalorder %s38, %s40
    %p44 = scmp.eq.s32.totalorder %s9, 0
    %p45 = por %p43, %p44
    %p46 = scmp.ne.s32.totalorder %s38, %s40
    %p47 = scmp.eq.s32.totalorder %s14, 3
    %p48 = por %p46, %p47
    %p49 = scmp.ne.s32.totalorder %s40, %s41
    %p50 = scmp.eq.s32.totalorder %s14, 0
    %p51 = por %p49, %p50
    %p52 = scmp.ne.s32.totalorder %s40, %s41
    %p53 = scmp.eq.s32.totalorder %s15, 3
    %p54 = por %p52, %p53
    %p56 = scmp.ne.s32.totalorder %s41, %s55
    %p57 = scmp.eq.s32.totalorder %s15, 0
    %p58 = por %p56, %p57
    %s59 = ssub.s32 %s9, %s16
    %p60 = scmp.eq.s32.totalorder %s59, 0
    %s62 = sadd.s32 %s61, 1
    %s63 = scalar_select %p60, %s61, %s62
    %p66 = pneg %p60
    %p67 = scmp.eq.s32.totalorder %s9, 3
    %p68 = por %p66, %p67
    %p69 = scmp.ne.s32.totalorder %s61, %s64
    %p70 = scmp.eq.s32.totalorder %s9, 0
    %p71 = por %p69, %p70
    %p72 = scmp.ne.s32.totalorder %s61, %s64
    %p73 = scmp.eq.s32.totalorder %s14, 3
    %p74 = por %p72, %p73
    %p75 = scmp.ne.s32.totalorder %s64, %s65
    %p76 = scmp.eq.s32.totalorder %s14, 0
    %p77 = por %p75, %p76
    %p78 = scmp.ne.s32.totalorder %s64, %s65
    %p79 = scmp.eq.s32.totalorder %s15, 3
    %p80 = por %p78, %p79
    %p82 = scmp.ne.s32.totalorder %s65, %s81
    %p83 = scmp.eq.s32.totalorder %s15, 0
    %p84 = por %p82, %p83
    %s85 = ssub.s32 %s9, %s16
    %p86 = scmp.eq.s32.totalorder %s85, 0
    %s88 = sadd.s32 %s87, 1
    %s89 = scalar_select %p86, %s87, %s88
    %p92 = pneg %p86
    %p93 = scmp.eq.s32.totalorder %s9, 3
    %p94 = por %p92, %p93
    %p95 = scmp.ne.s32.totalorder %s87, %s90
    %p96 = scmp.eq.s32.totalorder %s9, 0
    %p97 = por %p95, %p96
    %p98 = scmp.ne.s32.totalorder %s87, %s90
    %p99 = scmp.eq.s32.totalorder %s14, 3
    %p100 = por %p98, %p99
    %p101 = scmp.ne.s32.totalorder %s90, %s91
    %p102 = scmp.eq.s32.totalorder %s14, 0
    %p103 = por %p101, %p102
    %p104 = scmp.ne.s32.totalorder %s90, %s91
    %p105 = scmp.eq.s32.totalorder %s15, 3
    %p106 = por %p104, %p105
    %p108 = scmp.ne.s32.totalorder %s91, %s107
    %p109 = scmp.eq.s32.totalorder %s15, 0
    %p110 = por %p108, %p109
    %p111 = scmp.le.s32.totalorder 1, %s9
    %p112 = scmp.lt.s32.totalorder %s9, 5
    %p113 = pnand %p111, %p112
    %p114 = pneg %p113
    // Predicated region
    $region9: #{projection_forward.1} parent=5 // pred_check
      _
    $region10: #{projection_forward.1} parent=5 // pred_check_branch
      %116 = sbr.rel (%p113) target = $region12
    $region11: #{projection_forward.1} parent=5 // pred_region
      %s117 = ssub.s32 %s9, 1
      // Predicated region
      $region13: #{projection_forward.1} parent=11 // pred_check
        %p118 = pneg %p30
      $region14: #{projection_forward.1} parent=11 // pred_check_branch
        %120 = sbr.rel (%p118) target = $region16
      $region15: #{projection_forward.1} parent=11 // pred_region
        _
      $region16: #{projection_forward.1} parent=11 // pred_fallthru
        _
      // Predicated region
      $region17: #{projection_forward.1} parent=11 // pred_check
        %p121 = pneg %p51
      $region18: #{projection_forward.1} parent=11 // pred_check_branch
        %123 = sbr.rel (%p121) target = $region20
      $region19: #{projection_forward.1} parent=11 // pred_region
        _
      $region20: #{projection_forward.1} parent=11 // pred_fallthru
        _
    $region12: #{projection_forward.1} parent=5 // pred_fallthru
      _
    %p124 = scmp.lt.s32.totalorder %s9, 4
    // Predicated region
    $region21: #{projection_forward.1} parent=5 // pred_check
      %p125 = pneg %p124
    $region22: #{projection_forward.1} parent=5 // pred_check_branch
      %127 = sbr.rel (%p125) target = $region24
    $region23: #{projection_forward.1} parent=5 // pred_region
      // Predicated region
      $region25: #{projection_forward.1} parent=23 // pred_check
        %p128 = pneg %p71
      $region26: #{projection_forward.1} parent=23 // pred_check_branch
        %130 = sbr.rel (%p128) target = $region28
      $region27: #{projection_forward.1} parent=23 // pred_region
        %s131 = smul.u32 8, %s9
        %p132 = scmp.lt.s32.totalorder %s131, 31
        %s133 = scalar_select %p132, %s131, 31
        %s134 = smul.addr %s133, 2
        %s135 = smul.addr %s134, 8
        %s136 = scalar_lea.vmem %s2, %s135
        %s137 = smul.u32 8, %s9
      $region28: #{projection_forward.1} parent=23 // pred_fallthru
        _
    $region24: #{projection_forward.1} parent=5 // pred_fallthru
      _
    %p138 = scmp.le.s32.totalorder 1, %s9
    %p139 = scmp.lt.s32.totalorder %s9, 5
    %p140 = pnand %p138, %p139
    %p141 = pneg %p140
    // Predicated region
    $region29: #{projection_forward.1} parent=5 // pred_check
      _
    $region30: #{projection_forward.1} parent=5 // pred_check_branch
      %143 = sbr.rel (%p140) target = $region32
    $region31: #{projection_forward.1} parent=5 // pred_region
      %s144 = ssub.s32 %s9, 1
      %p145 = pneg %p30
      %p146 = pneg %p27
      %p147 = pneg %p51
      %p148 = pneg %p48
      %s149 = smul.u32 8, %s14
      %p150 = scmp.lt.s32.totalorder %s149, 31
      %s151 = scalar_select %p150, %s149, 31
      %s152 = smul.addr %s151, 2
      %s153 = smul.addr %s152, 8
      %s154 = scalar_lea.vmem %s2, %s153
      %p155 = pneg %p77
      %p156 = pneg %p74
      %p157 = pneg %p103
      %p158 = pneg %p100
      %s159 = smul.u32 2, %s14
      %p160 = scmp.lt.s32.totalorder %s159, 7
      %s161 = scalar_select %p160, %s159, 7
      %s162 = smul.addr %s161, 2
      %s163 = smul.addr %s162, 8
      %s164 = scalar_lea.vmem %s3, %s163
      %s165 = smul.u32 8, %s14
      %p166 = scmp.lt.s32.totalorder %s165, 31
      %s167 = scalar_select %p166, %s165, 31
      %s168 = smul.addr %s167, 2
      %s169 = smul.addr %s168, 8
      %s170 = scalar_lea.vmem %s2, %s169
      %s171 = smul.u32 8, %s14
      %s172 = smul.u32 2, %s14
      %p173 = scmp.lt.s32.totalorder %s172, 7
      %s174 = scalar_select %p173, %s172, 7
      %s175 = smul.addr %s174, 2
      %s176 = smul.addr %s175, 8
      %s177 = scalar_lea.vmem %s3, %s176
      %s178 = smul.u32 2, %s14
      %v179 = vld [vmem:[%s0] sm:$0xf]
      %v180 = vld [vmem:[%s1] sm:$0xf]
      %182 = vset.pattern.permute.xlu0 0
      %183 = vperm.xlu0 %182, %v180
      %v184 = vpop.permute.xlu0 %183
      %v186 = vrot.slane %v184, 4
      %vm188 = vcmask 1043456
      %v189 = vsel %vm188, %v184, %v186
      loop: start=0, step=1, limit=2
      $region33: #{projection_forward.1} parent=31 // loop_pre_header
        _
      $region34: #{projection_forward.1} parent=31 // loop_header
        %s191 = sphi 0, %s195
        %p192 = scmp.ge.s32.totalorder %s191, 2
      $region35: #{projection_forward.1} parent=31 // loop_header_branch
        %194 = sbr.rel (%p192) target = $region39
      $region36: #{projection_forward.1} parent=31 // loop_body
        %s196 = smul.u32 %s191, 32
        %s197 = smul.u32 %s191, 8
        %s198 = sshra.s32 %s196, 3
        %s199 = sand.u32 %s196, 7
        %s200 = smul.u32 %s198, 2
        %s201 = smul.addr %s200, 8
        %s202 = scalar_lea.vmem %s170, %s201
        %v203 = vld [vmem:[%s202] sm:$0xff]
        %v204 = vld [vmem:[%s202 + $0x8] sm:$0xff]
        %v205 = vld [vmem:[%s202 + $0x10] sm:$0xff]
        %v206 = vld [vmem:[%s202 + $0x18] sm:$0xff]
        %v207 = vld [vmem:[%s202 + $0x20] sm:$0xff]
        %v208 = vld [vmem:[%s202 + $0x28] sm:$0xff]
        %v209 = vld [vmem:[%s202 + $0x30] sm:$0xff]
        %v210 = vld [vmem:[%s202 + $0x38] sm:$0xff]
        %vm211 = vcmask 130048
        %v213 = vsel %vm211, %v179, 0
        %215 = vmatprep.subr.mxu0 0.0
        %216 = vmatpush1.msra.mxu0 0.0
        %217 = vmatprep.subr.mxu0 0.0
        %218 = vmatpush1.msra.mxu0 0.0
        %219 = vmatprep.subr.mxu0 0.0
        %220 = vmatpush1.msra.mxu0 0.0
        %221 = vmatprep.subr.mxu0 0.0
        %222 = vmatpush1.msra.mxu0 0.0
        %223 = vmatprep.subr.mxu0 0.0
        %224 = vmatpush1.msra.mxu0 0.0
        %225 = vmatprep.subr.mxu0 0.0
        %226 = vmatpush1.msra.mxu0 0.0
        %227 = vmatprep.subr.mxu0 0.0
        %228 = vmatpush1.msra.mxu0 0.0
        %229 = vmatprep.subr.mxu0 0.0
        %230 = vmatpush1.msra.mxu0 0.0
        %231 = vmatprep.subr.mxu0 0.0
        %232 = vmatpush1.msra.mxu0 0.0
        %233 = vmatprep.subr.mxu0 0.0
        %234 = vmatpush1.msra.mxu0 0.0
        %235 = vmatprep.subr.mxu0 0.0
        %236 = vmatpush1.msra.mxu0 0.0
        %237 = vmatprep.subr.mxu0 0.0
        %238 = vmatpush1.msra.mxu0 0.0
        %239 = vmatprep.subr.mxu0 0.0
        %240 = vmatpush1.msra.mxu0 0.0
        %241 = vmatprep.subr.mxu0 0.0
        %242 = vmatpush1.msra.mxu0 0.0
        %243 = vmatprep.subr.mxu0 %v206
        %244 = vmatpush1.msra.mxu0 %v205
        %245 = vmatprep.subr.mxu0 %v204
        %246 = vmatpush1.msra.mxu0 %v203
        %247 = vmatprep.subr.mxu0 0.0
        %248 = vmatpush2.msra.mxu0 0.0
        %249 = vmatprep.subr.mxu0 0.0
        %250 = vmatpush2.msra.mxu0 0.0
        %251 = vmatprep.subr.mxu0 0.0
        %252 = vmatpush2.msra.mxu0 0.0
        %253 = vmatprep.subr.mxu0 0.0
        %254 = vmatpush2.msra.mxu0 0.0
        %255 = vmatprep.subr.mxu0 0.0
        %256 = vmatpush2.msra.mxu0 0.0
        %257 = vmatprep.subr.mxu0 0.0
        %258 = vmatpush2.msra.mxu0 0.0
        %259 = vmatprep.subr.mxu0 0.0
        %260 = vmatpush2.msra.mxu0 0.0
        %261 = vmatprep.subr.mxu0 0.0
        %262 = vmatpush2.msra.mxu0 0.0
        %263 = vmatprep.subr.mxu0 0.0
        %264 = vmatpush2.msra.mxu0 0.0
        %265 = vmatprep.subr.mxu0 0.0
        %266 = vmatpush2.msra.mxu0 0.0
        %267 = vmatprep.subr.mxu0 0.0
        %268 = vmatpush2.msra.mxu0 0.0
        %269 = vmatprep.subr.mxu0 0.0
        %270 = vmatpush2.msra.mxu0 0.0
        %271 = vmatprep.subr.mxu0 0.0
        %272 = vmatpush2.msra.mxu0 0.0
        %273 = vmatprep.subr.mxu0 0.0
        %274 = vmatpush2.msra.mxu0 0.0
        %275 = vmatprep.subr.mxu0 0.0
        %276 = vmatpush2.msra.mxu0 0.0
        %277 = vmatprep.subr.mxu0 0.0
        %278 = vmatpush2.msra.mxu0 0.0
        %279 = vmatprep.mubr.f32.mxu0 0.0
        %280 = vmatmul.mubr.f32.gmra.mxu0 %v213
        %v281 = vpop.f32.mrf.mxu0
        %v282 = vadd.f32 0.0, %v281
        %v283 = vpop.f32.mrf.mxu0
        %v284 = vadd.f32 0.0, %v283
        %285 = vdwg.mxu0
        %286 = vmatprep.subr.mxu0 0.0
        %287 = vmatpush1.msra.mxu0 0.0
        %288 = vmatprep.subr.mxu0 0.0
        %289 = vmatpush1.msra.mxu0 0.0
        %290 = vmatprep.subr.mxu0 0.0
        %291 = vmatpush1.msra.mxu0 0.0
        %292 = vmatprep.subr.mxu0 0.0
        %293 = vmatpush1.msra.mxu0 0.0
        %294 = vmatprep.subr.mxu0 0.0
        %295 = vmatpush1.msra.mxu0 0.0
        %296 = vmatprep.subr.mxu0 0.0
        %297 = vmatpush1.msra.mxu0 0.0
        %298 = vmatprep.subr.mxu0 0.0
        %299 = vmatpush1.msra.mxu0 0.0
        %300 = vmatprep.subr.mxu0 0.0
        %301 = vmatpush1.msra.mxu0 0.0
        %302 = vmatprep.subr.mxu0 0.0
        %303 = vmatpush1.msra.mxu0 0.0
        %304 = vmatprep.subr.mxu0 0.0
        %305 = vmatpush1.msra.mxu0 0.0
        %306 = vmatprep.subr.mxu0 0.0
        %307 = vmatpush1.msra.mxu0 0.0
        %308 = vmatprep.subr.mxu0 0.0
        %309 = vmatpush1.msra.mxu0 0.0
        %310 = vmatprep.subr.mxu0 0.0
        %311 = vmatpush1.msra.mxu0 0.0
        %312 = vmatprep.subr.mxu0 0.0
        %313 = vmatpush1.msra.mxu0 0.0
        %314 = vmatprep.subr.mxu0 %v210
        %315 = vmatpush1.msra.mxu0 %v209
        %316 = vmatprep.subr.mxu0 %v208
        %317 = vmatpush1.msra.mxu0 %v207
        %318 = vmatprep.subr.mxu0 0.0
        %319 = vmatpush2.msra.mxu0 0.0
        %320 = vmatprep.subr.mxu0 0.0
        %321 = vmatpush2.msra.mxu0 0.0
        %322 = vmatprep.subr.mxu0 0.0
        %323 = vmatpush2.msra.mxu0 0.0
        %324 = vmatprep.subr.mxu0 0.0
        %325 = vmatpush2.msra.mxu0 0.0
        %326 = vmatprep.subr.mxu0 0.0
        %327 = vmatpush2.msra.mxu0 0.0
        %328 = vmatprep.subr.mxu0 0.0
        %329 = vmatpush2.msra.mxu0 0.0
        %330 = vmatprep.subr.mxu0 0.0
        %331 = vmatpush2.msra.mxu0 0.0
        %332 = vmatprep.subr.mxu0 0.0
        %333 = vmatpush2.msra.mxu0 0.0
        %334 = vmatprep.subr.mxu0 0.0
        %335 = vmatpush2.msra.mxu0 0.0
        %336 = vmatprep.subr.mxu0 0.0
        %337 = vmatpush2.msra.mxu0 0.0
        %338 = vmatprep.subr.mxu0 0.0
        %339 = vmatpush2.msra.mxu0 0.0
        %340 = vmatprep.subr.mxu0 0.0
        %341 = vmatpush2.msra.mxu0 0.0
        %342 = vmatprep.subr.mxu0 0.0
        %343 = vmatpush2.msra.mxu0 0.0
        %344 = vmatprep.subr.mxu0 0.0
        %345 = vmatpush2.msra.mxu0 0.0
        %346 = vmatprep.subr.mxu0 0.0
        %347 = vmatpush2.msra.mxu0 0.0
        %348 = vmatprep.subr.mxu0 0.0
        %349 = vmatpush2.msra.mxu0 0.0
        %350 = vmatprep.mubr.f32.mxu0 0.0
        %351 = vmatmul.mubr.f32.gmra.mxu0 %v213
        %v352 = vpop.f32.mrf.mxu0
        %v353 = vadd.f32 0.0, %v352
        %v354 = vpop.f32.mrf.mxu0
        %v355 = vadd.f32 0.0, %v354
        %356 = vdwg.mxu0
        %v359 = vrot.slane %v353, 4
        %v360 = vrot.slane %v355, 4
        %v363 = vsel %vm188, %v282, %v359
        %v364 = vsel %vm188, %v284, %v360
        %v365 = vadd.f32 %v363, %v189
        %v366 = vadd.f32 %v364, %v189
        %s367 = sshra.s32 %s197, 3
        %s368 = sand.u32 %s197, 7
        %s369 = smul.u32 %s367, 2
        %s370 = smul.addr %s369, 8
        %s371 = scalar_lea.vmem %s177, %s370
        %372 = vst [vmem:[%s371] sm:$0xff] %v365
        %373 = vst [vmem:[%s371 + $0x8] sm:$0xff] %v366
      $region37: #{projection_forward.1} parent=31 // loop_footer
        %s195 = sadd.s32 1, %s191
      $region38: #{projection_forward.1} parent=31 // loop_footer_branch
        %190 = sbr.rel target = $region34
      $region39: #{projection_forward.1} parent=31 // loop_exit
        _
      %s374 = smul.u32 2, %s14
      %p375 = scmp.lt.s32.totalorder %s374, 7
      %s376 = scalar_select %p375, %s374, 7
      %s377 = smul.addr %s376, 2
      %s378 = smul.addr %s377, 8
      %s379 = scalar_lea.vmem %s3, %s378
      // Predicated region
      $region40: #{projection_forward.1} parent=31 // pred_check
        %p380 = pneg %p100
      $region41: #{projection_forward.1} parent=31 // pred_check_branch
        %382 = sbr.rel (%p380) target = $region43
      $region42: #{projection_forward.1} parent=31 // pred_region
        %s383 = smul.u32 2, %s14
      $region43: #{projection_forward.1} parent=31 // pred_fallthru
        _
    $region32: #{projection_forward.1} parent=5 // pred_fallthru
      _
    %p384 = scmp.le.s32.totalorder 2, %s9
    // Predicated region
    $region44: #{projection_forward.1} parent=5 // pred_check
      %p385 = pneg %p384
    $region45: #{projection_forward.1} parent=5 // pred_check_branch
      %387 = sbr.rel (%p385) target = $region47
    $region46: #{projection_forward.1} parent=5 // pred_region
      %s388 = ssub.s32 %s9, 2
      // Predicated region
      $region48: #{projection_forward.1} parent=46 // pred_check
        %p389 = pneg %p106
      $region49: #{projection_forward.1} parent=46 // pred_check_branch
        %391 = sbr.rel (%p389) target = $region51
      $region50: #{projection_forward.1} parent=46 // pred_region
        %s392 = smul.u32 2, %s15
        %p393 = scmp.lt.s32.totalorder %s392, 7
        %s394 = scalar_select %p393, %s392, 7
        %s395 = smul.addr %s394, 2
        %s396 = smul.addr %s395, 8
        %s397 = scalar_lea.vmem %s3, %s396
      $region51: #{projection_forward.1} parent=46 // pred_fallthru
        _
    $region47: #{projection_forward.1} parent=5 // pred_fallthru
      _
  $region6: #{projection_forward.1} parent=0 // loop_footer
    %s13 = sadd.s32 1, %s9
  $region7: #{projection_forward.1} parent=0 // loop_footer_branch
    %8 = sbr.rel target = $region3
  $region8: #{projection_forward.1} parent=0 // loop_exit
    _

</llo_original>
